<compile_context>
chip_gen: v6e
topology: v6e:2x2x1
jax: 0.10.0
libtpu: 0.0.40
codegen_flags: <defaults>
</compile_context>

<pallas_src>
import functools
import math

import jax
import jax.numpy as jnp
from jax import lax
from jax.experimental import pallas as pl
from jax.experimental.pallas import tpu as pltpu


def _round_up(x, m):
    return ((x + m - 1) // m) * m


def _vmem_limit_bytes():
    """Generation-aware scoped-VMEM limit: ~3/4 of physical, capped at 64 MiB."""
    cap = 64 * 1024 * 1024                      # conservative default (v7x per-TC VMEM)
    try:
        info = pltpu.get_tpu_info()
        c = getattr(info, "vmem_capacity_bytes", None)
        if c:
            cap = int(c)
    except Exception:
        pass
    # -> 48 MiB on v7x (64 MiB physical), 64 MiB on v5e/v6e (128 MiB physical).
    return min(64 * 1024 * 1024, max(32 * 1024 * 1024, (cap * 3) // 4))


# ----------------------- single-block fast path (small inputs) -----------------------

def _small_kernel(x0_ref, x1_ref, lbl_ref, out_ref, *, threshold, margin, eps):
    x0 = x0_ref[...].astype(jnp.float32)
    x1 = x1_ref[...].astype(jnp.float32)
    diff = x0 - x1 + eps                                              # pairwise_distance eps
    dist = jnp.sqrt(jnp.sum(diff * diff, axis=-1, keepdims=True))     # (B, 1)
    sim = jnp.maximum(dist - threshold, 0.0)
    dis = jnp.maximum(margin - dist, 0.0)
    lbl = lbl_ref[...]                                                # (B, 1)
    per = lbl * (sim * sim) + (1.0 - lbl) * (dis * dis)
    out_ref[...] = jnp.mean(per, keepdims=True)                       # (1, 1)


# ----------------------------- tiled path (large inputs) -----------------------------

def _tiled_sumsq_kernel(x0_ref, x1_ref, out_ref, *, eps, D, TB, TD, nd_per, ragged):
    """Accumulates per-sample sum-of-squared-differences, folded to 128 lanes."""
    p = pl.program_id(0)           # parallel D-split (v7x megacore)
    d = pl.program_id(2)           # reduction axis ("arbitrary", innermost)

    @pl.when(d == 0)
    def _init():
        out_ref[...] = jnp.zeros_like(out_ref)

    d_base = (p * nd_per + d) * TD                       # global feature offset of block
    n_chunks = TD // 128
    if ragged:
        lane = lax.broadcasted_iota(jnp.int32, (TB, 128), 1)   # hoisted out of the loop

    # Fused chunk loop: each 128-lane chunk is loaded in native dtype, cast, squared,
    # masked and accumulated straight into the VMEM-resident output block.  Live data
    # never exceeds a few (TB, 128) tiles, so large TD tiles do not spill.
    for c in range(n_chunks):
        lo = c * 128
        x0c = x0_ref[:, lo:lo + 128].astype(jnp.float32)
        x1c = x1_ref[:, lo:lo + 128].astype(jnp.float32)
        diff = x0c - x1c + eps
        sq = diff * diff
        if ragged:
            # Mask feature columns >= D (partial edge block contains garbage).
            sq = jnp.where(lane < (D - d_base - lo), sq, 0.0)
        out_ref[...] += sq


# -------------------------------------- wrapper ---------------------------------------

def contrastive_threshold_hinge_loss(x0, x1, label, threshold=0.0, margin=2.0,
                                     eps=1e-6, dist_flag='l2',
                                     _force_tiled=False, _block_bytes=None):
    """x0/x1: (B, ...) any trailing shape (flattened); label: (B,) of {0,1}."""
    # TODO(synk): dist_flag 'l1' and 'cos' variants are not implemented (l2 only).
    assert dist_flag == 'l2', "only dist_flag='l2' is implemented"

    B = x0.shape[0]
    D = int(math.prod(x0.shape[1:])) if len(x0.shape) > 1 else 1
    x0f = x0.reshape(B, D)                       # native dtype; cast happens in-kernel
    x1f = x1.reshape(B, D)
    lblf = label.reshape(B).astype(jnp.float32)

    itemsize = jnp.dtype(x0f.dtype).itemsize
    vmem_limit = _vmem_limit_bytes()
    cost = pl.CostEstimate(flops=4 * B * D, transcendentals=B,
                           bytes_accessed=2 * B * D * itemsize + B * 512)

    # ---------- small-input fast path: one block, no grid / no wrapper epilogue ----------
    if not _force_tiled and (B * D * itemsize) <= 2 * 1024 * 1024:
        kernel = functools.partial(_small_kernel, threshold=float(threshold),
                                   margin=float(margin), eps=float(eps))
        out = pl.pallas_call(
            kernel,
            out_shape=jax.ShapeDtypeStruct((1, 1), jnp.float32),
            in_specs=[pl.BlockSpec(memory_space=pltpu.MemorySpace.VMEM)] * 3,
            out_specs=pl.BlockSpec(memory_space=pltpu.MemorySpace.VMEM),
            compiler_params=pltpu.CompilerParams(vmem_limit_bytes=vmem_limit),
            cost_estimate=cost,
        )(x0f, x1f, lblf.reshape(B, 1))
        return out[0, 0]

    # ---------------- tiled, double-buffered, megacore-friendly path ----------------
    # Per-input block budget: large enough to amortize the ~0.35 us/step grid overhead,
    # small enough that 2 inputs x 2 pipeline buffers fit the generation-aware limit.
    if _block_bytes is None:
        _block_bytes = min(8 * 1024 * 1024, (vmem_limit * 3 // 4) // 4)

    TB = min(256, _round_up(B, 8))                             # sublane-aligned batch tile
    D128 = _round_up(D, 128)
    td_cap = max(128, min(32768, (_block_bytes // (TB * itemsize)) // 128 * 128))
    TD = min(D128, td_cap)                                     # lane-dense feature tile
    nb = pl.cdiv(B, TB)
    nd = pl.cdiv(D, TD)

    # Give the parallel grid work for both v7x TensorCores even when nb == 1 by
    # splitting the D blocks into two halves (no-op / harmless on v5e & v6e).
    if nb == 1 and nd >= 2 and nd % 2 == 0:
        P, nd_per = 2, nd // 2
    else:
        P, nd_per = 1, nd

    ragged = (D % TD) != 0
    kernel = functools.partial(_tiled_sumsq_kernel, eps=float(eps), D=D,
                               TB=TB, TD=TD, nd_per=nd_per, ragged=ragged)

    partials = pl.pallas_call(
        kernel,
        out_shape=jax.ShapeDtypeStruct((nb * TB, P * 128), jnp.float32),
        grid_spec=pltpu.PrefetchScalarGridSpec(
            num_scalar_prefetch=0,
            grid=(P, nb, nd_per),
            in_specs=[
                pl.BlockSpec((TB, TD), lambda p, b, d: (b, p * nd_per + d)),
                pl.BlockSpec((TB, TD), lambda p, b, d: (b, p * nd_per + d)),
            ],
            out_specs=pl.BlockSpec((TB, 128), lambda p, b, d: (b, p)),
        ),
        compiler_params=pltpu.CompilerParams(
            dimension_semantics=("parallel", "parallel", "arbitrary"),
            vmem_limit_bytes=vmem_limit,
        ),
        cost_estimate=cost,
    )(x0f, x1f)

    # Tiny O(B) epilogue.  Rows >= B (garbage from partial edge blocks) are sliced off
    # before any reduction; each valid row holds that sample's partial sums of squares
    # replicated/split across P*128 lanes.
    row_sq = jnp.sum(partials[:B], axis=-1)                    # (B,)
    dist = jnp.sqrt(row_sq)
    sim = jnp.maximum(dist - float(threshold), 0.0)
    dis = jnp.maximum(float(margin) - dist, 0.0)
    return jnp.mean(lblf * (sim * sim) + (1.0 - lblf) * (dis * dis))


# ------------------------------------- reference --------------------------------------

def _reference(x0, x1, label, threshold=0.0, margin=2.0, eps=1e-6):
    B = x0.shape[0]
    x0f = x0.reshape(B, -1).astype(jnp.float32)
    x1f = x1.reshape(B, -1).astype(jnp.float32)
    dist = jnp.sqrt(jnp.sum((x0f - x1f + eps) ** 2, axis=-1))
    sim = jnp.maximum(dist - threshold, 0.0)
    dis = jnp.maximum(margin - dist, 0.0)
    lbl = label.astype(jnp.float32)
    return jnp.mean(lbl * sim ** 2 + (1.0 - lbl) * dis ** 2)


if __name__ == "__main__":
    key = jax.random.PRNGKey(0)
    ks = jax.random.split(key, 12)

    # Test 1: small f32 feature maps -> single-block fast path.
    B, C, H, W = 2, 4, 16, 16
    x0 = jax.random.normal(ks[0], (B, C, H, W), dtype=jnp.float32)
    x1 = jax.random.normal(ks[1], (B, C, H, W), dtype=jnp.float32)
    lbl = jax.random.bernoulli(ks[2], 0.5, (B,)).astype(jnp.float32)
    loss = jax.block_until_ready(
        contrastive_threshold_hinge_loss(x0, x1, lbl, threshold=0.0, margin=2.0))
    ref = jax.block_until_ready(_reference(x0, x1, lbl))
    assert jnp.allclose(loss, ref, atol=1e-5, rtol=1e-5), (loss, ref)

    # Test 2: bf16 feature maps, forced tiled -> native-dtype streaming, 64-chunk fold.
    B2, C2, H2, W2 = 40, 8, 32, 32
    y0 = jax.random.normal(ks[3], (B2, C2, H2, W2), dtype=jnp.bfloat16)
    y1 = jax.random.normal(ks[4], (B2, C2, H2, W2), dtype=jnp.bfloat16)
    lbl2 = jax.random.bernoulli(ks[5], 0.5, (B2,)).astype(jnp.float32)
    loss2 = jax.block_until_ready(
        contrastive_threshold_hinge_loss(y0, y1, lbl2, _force_tiled=True))
    ref2 = jax.block_until_ready(_reference(y0, y1, lbl2))
    assert jnp.allclose(loss2, ref2, rtol=2e-3, atol=1e-3), (loss2, ref2)

    # Test 3: ragged D (no jnp.pad) -> partial edge block + in-kernel column mask.
    B3, D3 = 24, 1000
    z0 = jax.random.normal(ks[6], (B3, D3), dtype=jnp.float32)
    z1 = jax.random.normal(ks[7], (B3, D3), dtype=jnp.float32)
    lbl3 = jax.random.bernoulli(ks[8], 0.5, (B3,)).astype(jnp.float32)
    loss3 = jax.block_until_ready(
        contrastive_threshold_hinge_loss(z0, z1, lbl3, _force_tiled=True))
    ref3 = jax.block_until_ready(_reference(z0, z1, lbl3))
    assert jnp.allclose(loss3, ref3, rtol=1e-4, atol=1e-4), (loss3, ref3)

    # Test 4: multi D-tile + parallel D-split (small block budget forces nd=4 -> P=2).
    B4, D4 = 16, 4096
    w0 = jax.random.normal(ks[9], (B4, D4), dtype=jnp.float32)
    w1 = jax.random.normal(ks[10], (B4, D4), dtype=jnp.float32)
    lbl4 = jax.random.bernoulli(ks[11], 0.5, (B4,)).astype(jnp.float32)
    loss4 = jax.block_until_ready(
        contrastive_threshold_hinge_loss(w0, w1, lbl4, _force_tiled=True,
                                         _block_bytes=64 * 1024))
    ref4 = jax.block_until_ready(_reference(w0, w1, lbl4))
    assert jnp.allclose(loss4, ref4, rtol=1e-4, atol=1e-4), (loss4, ref4)

    print("KERNEL_OK")
</pallas_src>

<mosaic_0001>
module attributes {stable_mosaic.version = 11 : i64} {
  func.func @_small_kernel(%arg0: memref<2x1024xf32, #tpu.memory_space<vmem>>, %arg1: memref<2x1024xf32, #tpu.memory_space<vmem>>, %arg2: memref<2x1xf32, #tpu.memory_space<vmem>>, %arg3: memref<1x1xf32, #tpu.memory_space<vmem>>) attributes {dimension_semantics = [], scalar_prefetch = 0 : i64, scratch_operands = 0 : i64, tpu.core_type = #tpu.core_type<tc>} {
    %c0 = arith.constant 0 : index
    %c0_0 = arith.constant 0 : index
    %0 = vector.load %arg0[%c0, %c0_0] : memref<2x1024xf32, #tpu.memory_space<vmem>>, vector<2x1024xf32>
    %c0_1 = arith.constant 0 : index
    %c0_2 = arith.constant 0 : index
    %1 = vector.load %arg1[%c0_1, %c0_2] : memref<2x1024xf32, #tpu.memory_space<vmem>>, vector<2x1024xf32>
    %2 = arith.subf %0, %1 : vector<2x1024xf32>
    %cst = arith.constant 9.99999997E-7 : f32
    %3 = vector.broadcast %cst : f32 to vector<2x1024xf32>
    %4 = arith.addf %2, %3 : vector<2x1024xf32>
    %5 = arith.mulf %4, %4 : vector<2x1024xf32>
    %cst_3 = arith.constant dense<0.000000e+00> : vector<2xf32>
    %6 = vector.multi_reduction <add>, %5, %cst_3 [1] : vector<2x1024xf32> to vector<2xf32>
    %7 = vector.shape_cast %6 : vector<2xf32> to vector<2x1xf32>
    %8 = math.sqrt %7 : vector<2x1xf32>
    %cst_4 = arith.constant 0.000000e+00 : f32
    %9 = vector.broadcast %cst_4 : f32 to vector<2x1xf32>
    %10 = arith.subf %8, %9 : vector<2x1xf32>
    %cst_5 = arith.constant 0.000000e+00 : f32
    %11 = vector.broadcast %cst_5 : f32 to vector<2x1xf32>
    %12 = arith.maximumf %10, %11 : vector<2x1xf32>
    %cst_6 = arith.constant 2.000000e+00 : f32
    %13 = vector.broadcast %cst_6 : f32 to vector<2x1xf32>
    %14 = arith.subf %13, %8 : vector<2x1xf32>
    %cst_7 = arith.constant 0.000000e+00 : f32
    %15 = vector.broadcast %cst_7 : f32 to vector<2x1xf32>
    %16 = arith.maximumf %14, %15 : vector<2x1xf32>
    %c0_8 = arith.constant 0 : index
    %c0_9 = arith.constant 0 : index
    %17 = vector.load %arg2[%c0_8, %c0_9] : memref<2x1xf32, #tpu.memory_space<vmem>>, vector<2x1xf32>
    %18 = arith.mulf %12, %12 : vector<2x1xf32>
    %19 = arith.mulf %17, %18 : vector<2x1xf32>
    %cst_10 = arith.constant 1.000000e+00 : f32
    %20 = vector.broadcast %cst_10 : f32 to vector<2x1xf32>
    %21 = arith.subf %20, %17 : vector<2x1xf32>
    %22 = arith.mulf %16, %16 : vector<2x1xf32>
    %23 = arith.mulf %21, %22 : vector<2x1xf32>
    %24 = arith.addf %19, %23 : vector<2x1xf32>
    %25 = vector.shape_cast %24 : vector<2x1xf32> to vector<1x2x1xf32>
    %cst_11 = arith.constant dense<0.000000e+00> : vector<1xf32>
    %26 = vector.multi_reduction <add>, %25, %cst_11 [1, 2] : vector<1x2x1xf32> to vector<1xf32>
    %27 = vector.shape_cast %26 : vector<1xf32> to vector<1x1x1xf32>
    %28 = vector.extract %27[0, 0, 0] : f32 from vector<1x1x1xf32>
    %29 = vector.broadcast %28 : f32 to vector<1x1xf32>
    %cst_12 = arith.constant 2.000000e+00 : f32
    %30 = vector.broadcast %cst_12 : f32 to vector<1x1xf32>
    %31 = arith.divf %29, %30 : vector<1x1xf32>
    %c0_13 = arith.constant 0 : index
    %c0_14 = arith.constant 0 : index
    %32 = vector.load %arg3[%c0_13, %c0_14] : memref<1x1xf32, #tpu.memory_space<vmem>>, vector<1x1xf32>
    tpu.vector_store %arg3[%c0_13, %c0_14], %31 {strides = array<i32>} : memref<1x1xf32, #tpu.memory_space<vmem>>, vector<1x1xf32>,
    return
  }
}

</mosaic_0001>

<llo_original>
// kernel: tpu_custom_call.1
$region0: #{tpu_custom_call.1}
  #allocation0 [shape = 'u32[]', space=smem, size = 0x4, offset = 0x4, fixed_abs, tag = 'smem constant byte address 0x4 - core index']
  #allocation1 [shape = 'u32[144,128]{1,0:T(1,128)}', space=vmem, size = 0x12000, scoped, tag = 'internal scratch']
  %s0 = inlined_call_operand.hbm [shape: f32[2,1024], index: 0, kind: input, shape index: {}]
  %s1 = inlined_call_operand.hbm [shape: f32[2,1024], index: 1, kind: input, shape index: {}]
  %s2 = inlined_call_operand.vmem [shape: f32[2,1], index: 2, kind: input, shape index: {}]
  %s3 = inlined_call_operand.hbm [shape: f32[1,1], index: 3, kind: output, shape index: {}]
  %s4 = sld [smem:[#allocation0]]
  $region30: #{tpu_custom_call.1} parent=0
    _
  %s6 = ssub.s32 1, %s4
  %s7 = scalar_select 0, %s6, %s4
  $region1: #{tpu_custom_call.1} parent=0
    #allocation2 [shape = 'u8[8192]{0}', space=vmem, size = 0x2000, scoped, tag = 'input window, operand 0, single buffered']
    #allocation3 [shape = 's32[1]{0}', space=sflag, size = 0x4, scoped, tag = 'scoped memory for tpu_custom_call.1']
    #allocation4 [shape = 's32[1]{0}', space=sflag, size = 0x4, scoped, tag = 'scoped memory for tpu_custom_call.1']
    #allocation5 [shape = 'u8[8192]{0}', space=vmem, size = 0x2000, scoped, tag = 'input window, operand 1, single buffered']
    #allocation6 [shape = 's32[1]{0}', space=sflag, size = 0x4, scoped, tag = 'scoped memory for tpu_custom_call.1']
    #allocation7 [shape = 'u8[512]{0}', space=vmem, size = 0x400, scoped, tag = 'output window, operand 0, single buffered']
    %8 = vsyncpa [#allocation3], 0
    %9 = vsyncpa [#allocation6], 0
    %10 = vsyncpa [#allocation4], 0
    // Predicated region
    $region2: #{tpu_custom_call.1} parent=1 // pred_check
      _
    $region3: #{tpu_custom_call.1} parent=1 // pred_check_branch
      %12 = sbr.rel (0) target = $region5
    $region4: #{tpu_custom_call.1} parent=1 // pred_region
      %s14 = ssub.s32 256, 256
      %15 = vsyncadd [#allocation3], %s14
      %s17 = sshll.u32 [#allocation2], 4
      %s18 = int_to_ptr.vmem [resolvable:$true] %s17
      %20 = dma.hbm_to_vmem [thread:$0]  %s0, 256, %s18, [#allocation3]
    $region5: #{tpu_custom_call.1} parent=1 // pred_fallthru
      _
    // Predicated region
    $region6: #{tpu_custom_call.1} parent=1 // pred_check
      _
    $region7: #{tpu_custom_call.1} parent=1 // pred_check_branch
      %22 = sbr.rel (0) target = $region9
    $region8: #{tpu_custom_call.1} parent=1 // pred_region
      %s24 = ssub.s32 256, 256
      %25 = vsyncadd [#allocation6], %s24
      %s27 = sshll.u32 [#allocation5], 4
      %s28 = int_to_ptr.vmem [resolvable:$true] %s27
      %30 = dma.hbm_to_vmem [thread:$0]  %s1, 256, %s28, [#allocation6]
    $region9: #{tpu_custom_call.1} parent=1 // pred_fallthru
      _
    // Predicated region
    $region10: #{tpu_custom_call.1} parent=1 // pred_check
      _
    $region11: #{tpu_custom_call.1} parent=1 // pred_check_branch
      %32 = sbr.rel (0) target = $region13
    $region12: #{tpu_custom_call.1} parent=1 // pred_region
      _
    $region13: #{tpu_custom_call.1} parent=1 // pred_fallthru
      _
    // Predicated region
    $region14: #{tpu_custom_call.1} parent=1 // pred_check
      _
    $region15: #{tpu_custom_call.1} parent=1 // pred_check_branch
      %34 = sbr.rel (0) target = $region17
    $region16: #{tpu_custom_call.1} parent=1 // pred_region
      %35 = dma.done [#allocation3], 256
    $region17: #{tpu_custom_call.1} parent=1 // pred_fallthru
      _
    // Predicated region
    $region18: #{tpu_custom_call.1} parent=1 // pred_check
      _
    $region19: #{tpu_custom_call.1} parent=1 // pred_check_branch
      %37 = sbr.rel (0) target = $region21
    $region20: #{tpu_custom_call.1} parent=1 // pred_region
      %38 = dma.done [#allocation6], 256
    $region21: #{tpu_custom_call.1} parent=1 // pred_fallthru
      _
    %v39 = vld [vmem:[#allocation2] sm:$0xff]
    %v40 = vld [vmem:[#allocation2 + $0x8] sm:$0xff]
    %v41 = vld [vmem:[#allocation5] sm:$0xff]
    %v42 = vld [vmem:[#allocation5 + $0x8] sm:$0xff]
    %v43 = vsub.f32 %v39, %v41
    %v44 = vsub.f32 %v40, %v42
    %v45 = vadd.f32 %v43, 1e-06
    %v46 = vadd.f32 %v44, 1e-06
    %v47 = vmul.f32 %v45, %v45
    %v48 = vmul.f32 %v46, %v46
    %v51 = vcombine.high %v47, %v47
    %v53 = vunpack.c.l.s4 1983009808
    %v54 = vunpack.c.0.s8 %v53
    %v55 = vlaneseq
    %v56 = vshrl.u32 %v55, 7
    %v57 = vsub.s32 %v54, %v56
    %v58 = vrot.slane %v47, %v57
    %v60 = vunpack.c.l.s4 1983009808
    %v61 = vunpack.c.0.s8 %v60
    %v62 = vlaneseq
    %v63 = vshrl.u32 %v62, 7
    %v64 = vsub.s32 %v61, %v63
    %v65 = vrot.slane %v51, %v64
    %v66 = vcombine.high %v58, %v58
    %v67 = vcombine.high %v65, %v65
    %v68 = vcombine.high %v48, %v48
    %v70 = vunpack.c.l.s4 1983009808
    %v71 = vunpack.c.0.s8 %v70
    %v72 = vlaneseq
    %v73 = vshrl.u32 %v72, 7
    %v74 = vsub.s32 %v71, %v73
    %v75 = vrot.slane %v48, %v74
    %v77 = vunpack.c.l.s4 1983009808
    %v78 = vunpack.c.0.s8 %v77
    %v79 = vlaneseq
    %v80 = vshrl.u32 %v79, 7
    %v81 = vsub.s32 %v78, %v80
    %v82 = vrot.slane %v68, %v81
    %v83 = vcombine.high %v75, %v75
    %v84 = vcombine.high %v82, %v82
    %vm93 = vcmask 1041408
    %v94 = vsel %vm93, %v58, 0.0
    %v95 = vsel %vm93, %v66, 0.0
    %v96 = vadd.f32 %v94, %v95
    %v97 = vsel %vm93, %v65, 0.0
    %v98 = vadd.f32 %v96, %v97
    %v99 = vsel %vm93, %v67, 0.0
    %v100 = vadd.f32 %v98, %v99
    %v101 = vsel %vm93, %v75, 0.0
    %v102 = vadd.f32 %v100, %v101
    %v103 = vsel %vm93, %v83, 0.0
    %v104 = vadd.f32 %v102, %v103
    %v105 = vsel %vm93, %v82, 0.0
    %v106 = vadd.f32 %v104, %v105
    %v107 = vsel %vm93, %v84, 0.0
    %v108 = vadd.f32 %v106, %v107
    %109 = vadd.xlane.f32.xlu0 %v108
    %v110 = vpop.xlane.xlu0 %109
    %v111 = vrsqrt.pop %v110
    %v112 = vmul.f32 %v110, %v111
    %vm113 = vcmp.eq.f32.partialorder %v110, inf
    %v114 = vsel %vm113, %v110, %v112
    %vm115 = vcmp.eq.f32.partialorder %v110, 0.0
    %v116 = vand.u32 %v110, 2147483648
    %v117 = vsel %vm115, %v116, %v114
    %v118 = vmax.f32 %v117, 0.0
    %v119 = vsub.f32 2.0, %v117
    %v120 = vmax.f32 %v119, 0.0
    %v121 = vld [vmem:[%s2] sm:$0x3]
    %v122 = vmul.f32 %v118, %v118
    %v123 = vmul.f32 %v121, %v122
    %v124 = vsub.f32 1.0, %v121
    %v125 = vmul.f32 %v120, %v120
    %v126 = vmul.f32 %v124, %v125
    %v127 = vadd.f32 %v123, %v126
    %vm128 = vcmask 1024
    %v129 = vsel %vm128, %v127, 0.0
    %130 = vadd.xlane.f32.xlu0 %v129
    %v131 = vpop.xlane.xlu0 %130
    %v132 = vrot.slane %v131, 4
    %v133 = vadd.f32 %v131, %v132
    %v134 = vrot.slane %v133, 2
    %v135 = vadd.f32 %v133, %v134
    %v136 = vrot.slane %v135, 1
    %v137 = vadd.f32 %v135, %v136
    %s138 = vtos %v137
    %v139 = vstv %s138
    %v140 = vrcp.pop 2.0
    %v141 = vmul.f32 %v139, %v140
    %vm142 = vcmask 0
    %143 = vst.msk [vmem:[#allocation7] sm:$0x1] %vm142, %v141
    // Predicated region
    $region22: #{tpu_custom_call.1} parent=1 // pred_check
      _
    $region23: #{tpu_custom_call.1} parent=1 // pred_check_branch
      %145 = sbr.rel (0) target = $region25
    $region24: #{tpu_custom_call.1} parent=1 // pred_region
      %s147 = ssub.s32 16, 16
      %148 = vsyncadd [#allocation4], %s147
      %s150 = sshll.u32 [#allocation7], 4
      %s151 = int_to_ptr.vmem [resolvable:$true] %s150
      %153 = dma.vmem_to_hbm [thread:$0]  %s151, 16, %s3, [#allocation4]
    $region25: #{tpu_custom_call.1} parent=1 // pred_fallthru
      _
    // Predicated region
    $region26: #{tpu_custom_call.1} parent=1 // pred_check
      _
    $region27: #{tpu_custom_call.1} parent=1 // pred_check_branch
      %155 = sbr.rel (0) target = $region29
    $region28: #{tpu_custom_call.1} parent=1 // pred_region
      %156 = dma.done [#allocation4], 16
    $region29: #{tpu_custom_call.1} parent=1 // pred_fallthru
      _
    %157 = vsyncpa [#allocation3], 1
    %158 = vsyncpa [#allocation6], 1
    %159 = vsyncpa [#allocation4], 1

</llo_original>
